<compile_context>
chip_gen: v6e
topology: v6e:2x2x1
jax: 0.10.0
libtpu: 0.0.40
codegen_flags: <defaults>
</compile_context>

<pallas_src>
import jax
import jax.numpy as jnp
from jax import lax
from jax.experimental import pallas as pl
from jax.experimental.pallas import tpu as pltpu


def _round_up(x, m):
    return ((x + m - 1) // m) * m


# ---------------------------------------------------------------------------
# Kernel bodies
# ---------------------------------------------------------------------------

def _mlp_head_kernel_lane_dense(x_ref, w1_ref, b1_ref, w2t_ref, b2_ref, o_ref):
    """dim_out == 1 path: layer-2 result laid out (dim_out, tile_m) -> lane-dense."""
    # Layer 1: MXU matmul in compute dtype (bf16), f32 accumulation.
    h = jnp.dot(x_ref[...], w1_ref[...], preferred_element_type=jnp.float32)
    h = jnp.maximum(h + b1_ref[...].astype(jnp.float32), 0.0)
    # Layer 2: contract hidden dim of W2^T [dim_out, H] with hidden dim of h
    # [tile_m, H] -> (dim_out, tile_m).  Nodes land on the lane axis, so the
    # store below is a full-width vst instead of a 1-lane masked store per row.
    out = lax.dot_general(
        w2t_ref[...], h.astype(w2t_ref.dtype),
        dimension_numbers=(((1,), (1,)), ((), ())),
        preferred_element_type=jnp.float32)
    out = out + b2_ref[...].astype(jnp.float32)
    o_ref[...] = out[None].astype(o_ref.dtype)      # block (1, dim_out, tile_m)


def _mlp_head_kernel_standard(x_ref, w1_ref, b1_ref, w2_ref, b2_ref, o_ref):
    """dim_out >= 2 path: emit (tile_m, dim_out) directly (no wrapper relayout)."""
    h = jnp.dot(x_ref[...], w1_ref[...], preferred_element_type=jnp.float32)
    h = jnp.maximum(h + b1_ref[...].astype(jnp.float32), 0.0)
    out = jnp.dot(h.astype(w2_ref.dtype), w2_ref[...],
                  preferred_element_type=jnp.float32)
    out = out + b2_ref[...].astype(jnp.float32)
    o_ref[...] = out.astype(o_ref.dtype)


# ---------------------------------------------------------------------------
# Wrapper
# ---------------------------------------------------------------------------

def _resident_spec(shape, itemsize, single_buffer_threshold=512 * 1024):
    """Grid-invariant resident (index_map -> origin).

    Large residents are single-buffered: a constant block gains nothing from the
    default double buffer, and on v5e (16 MiB default scoped VMEM) a dim_in~1024
    f32/bf16 W1 would otherwise eat most of the budget.
    """
    nbytes = itemsize
    for d in shape:
        nbytes *= d
    index_map = lambda i: (0,) * len(shape)
    if nbytes >= single_buffer_threshold:
        return pl.BlockSpec(shape, index_map, pipeline_mode=pl.Buffered(1))
    return pl.BlockSpec(shape, index_map)


def _vmem_estimate(tile_m, dim_in, dim_hidden, dim_out, in_bytes, out_bytes,
                   lane_dense):
    """Rough VMEM footprint (with (8,128) tile padding) for a given node tile."""
    def pad(r, c, b):
        return _round_up(max(r, 1), 8) * _round_up(max(c, 1), 128) * b
    est = 2 * pad(tile_m, dim_in, in_bytes)              # x, double-buffered
    est += pad(dim_in, dim_hidden, in_bytes)             # W1 resident
    est += pad(dim_out, dim_hidden, in_bytes)            # W2 / W2^T resident
    est += pad(1, dim_hidden, 4) + pad(dim_out, 1, 4)    # biases (f32)
    est += pad(tile_m, dim_hidden, 4)                    # hidden activations (f32)
    if lane_dense:
        est += 2 * pad(dim_out, tile_m, out_bytes)       # output, double-buffered
    else:
        est += 2 * pad(tile_m, dim_out, out_bytes)
    return est


def gnn_inductive_node_head(x, w1, b1, w2, b2, *,
                            tile_m=1024,
                            compute_dtype=jnp.bfloat16,
                            out_dtype=jnp.float32):
    """Post-MP MLP head applied row-wise: x [N, dim_in] -> pred [N, dim_out].

    Weights use the [in, out] layout (W1: [dim_in, dim_hidden], W2: [dim_hidden,
    dim_out]).  Matmul operands are cast to `compute_dtype` (bf16 by default);
    accumulation and the returned prediction stay f32.
    """
    N, dim_in = x.shape
    dim_hidden = w1.shape[1]
    dim_out = w2.shape[1]

    in_bytes = jnp.dtype(compute_dtype).itemsize
    out_bytes = jnp.dtype(out_dtype).itemsize
    lane_dense = (dim_out == 1)   # only here is the wrapper reshape layout-free

    # ---- node-tile selection ----------------------------------------------
    TARGET_STEPS = 8                    # >= ~4 pipelined tiles per TC on v7x megacore
    VMEM_BUDGET = 24 * 1024 * 1024      # headroom under v7x's 32 MiB scoped default

    tile_m = min(tile_m, _round_up(N, 128))                                # don't exceed N
    tile_m = min(tile_m, max(128, _round_up(pl.cdiv(N, TARGET_STEPS), 128)))  # enough steps
    tile_m = max(128, _round_up(tile_m, 128))                               # lane/sublane align
    while tile_m > 128 and _vmem_estimate(tile_m, dim_in, dim_hidden, dim_out,
                                          in_bytes, out_bytes,
                                          lane_dense) > VMEM_BUDGET:
        tile_m -= 128
    num_tiles = pl.cdiv(N, tile_m)

    est = _vmem_estimate(tile_m, dim_in, dim_hidden, dim_out,
                         in_bytes, out_bytes, lane_dense)
    vmem_limit = int(min(max(32 * 1024 * 1024, est + (8 << 20)), 60 * 1024 * 1024))

    # ---- operands -----------------------------------------------------------
    xc = x.astype(compute_dtype)
    w1c = w1.astype(compute_dtype)
    w2c = w2.astype(compute_dtype)
    b1_2d = b1.reshape(1, dim_hidden).astype(jnp.float32)

    cost = pl.CostEstimate(
        flops=2 * N * dim_in * dim_hidden + 2 * N * dim_hidden * dim_out,
        transcendentals=0,
        bytes_accessed=(N * dim_in * in_bytes
                        + (dim_in * dim_hidden + dim_hidden * dim_out) * in_bytes
                        + (dim_hidden + dim_out) * 4
                        + N * dim_out * out_bytes),
    )
    compiler_params = pltpu.CompilerParams(
        dimension_semantics=("parallel",),   # node tiles are independent (megacore)
        vmem_limit_bytes=vmem_limit,
    )

    if lane_dense:
        out = pl.pallas_call(
            _mlp_head_kernel_lane_dense,
            out_shape=jax.ShapeDtypeStruct((num_tiles, dim_out, tile_m), out_dtype),
            grid=(num_tiles,),
            in_specs=[
                pl.BlockSpec((tile_m, dim_in), lambda i: (i, 0)),    # x tile
                _resident_spec((dim_in, dim_hidden), in_bytes),      # W1
                _resident_spec((1, dim_hidden), 4),                  # b1
                _resident_spec((dim_out, dim_hidden), in_bytes),     # W2^T
                _resident_spec((dim_out, 1), 4),                     # b2
            ],
            out_specs=pl.BlockSpec((1, dim_out, tile_m), lambda i: (i, 0, 0)),
            compiler_params=compiler_params,
            cost_estimate=cost,
        )(xc, w1c, b1_2d, w2c.T, b2.reshape(dim_out, 1).astype(jnp.float32))
        # (num_tiles, 1, tile_m) row-major is bit-identical to (num_tiles*tile_m, 1):
        # the reshape is layout-free.  Tail rows (padded tile) are dropped by [:N].
        pred = out.reshape(num_tiles * tile_m, dim_out)[:N]
    else:
        out = pl.pallas_call(
            _mlp_head_kernel_standard,
            out_shape=jax.ShapeDtypeStruct((N, dim_out), out_dtype),
            grid=(num_tiles,),
            in_specs=[
                pl.BlockSpec((tile_m, dim_in), lambda i: (i, 0)),    # x tile
                _resident_spec((dim_in, dim_hidden), in_bytes),      # W1
                _resident_spec((1, dim_hidden), 4),                  # b1
                _resident_spec((dim_hidden, dim_out), in_bytes),     # W2
                _resident_spec((1, dim_out), 4),                     # b2
            ],
            out_specs=pl.BlockSpec((tile_m, dim_out), lambda i: (i, 0)),
            compiler_params=compiler_params,
            cost_estimate=cost,
        )(xc, w1c, b1_2d, w2c, b2.reshape(1, dim_out).astype(jnp.float32))
        pred = out

    return pred


def forward(batch_x, batch_y, params, *, tile_m=1024,
            compute_dtype=jnp.bfloat16):
    """Mirror of GNNInductiveNodeHead.forward: returns (pred, label)."""
    w1, b1, w2, b2 = params
    pred = gnn_inductive_node_head(batch_x, w1, b1, w2, b2,
                                   tile_m=tile_m, compute_dtype=compute_dtype)
    return pred, batch_y


# ---------------------------------------------------------------------------
# Demo / self-check
# ---------------------------------------------------------------------------

def _bf16_reference(x, w1, b1, w2, b2):
    """Pure-JAX reference with the same bf16-operand / f32-accumulate numerics."""
    xb, w1b, w2b = (a.astype(jnp.bfloat16) for a in (x, w1, w2))
    h = jnp.maximum(jnp.dot(xb, w1b, preferred_element_type=jnp.float32) + b1, 0.0)
    return jnp.dot(h.astype(jnp.bfloat16), w2b,
                   preferred_element_type=jnp.float32) + b2


if __name__ == "__main__":
    key = jax.random.PRNGKey(0)
    kx, kw1, kb1, kw2, kb2, ky, kw2b, kb2b, kx2 = jax.random.split(key, 9)

    # --- Case A: binary node prediction (dim_out = 1, lane-dense path) ------
    N, dim_in = 1024, 32
    dim_hidden = dim_in          # GraphGym MLP uses dim_inner = dim_in by default
    dim_out = 1

    x = jax.random.normal(kx, (N, dim_in), dtype=jnp.float32)
    y = jax.random.randint(ky, (N,), 0, 2).astype(jnp.int32)
    w1 = jax.random.normal(kw1, (dim_in, dim_hidden), jnp.float32) / jnp.sqrt(dim_in)
    b1 = jax.random.normal(kb1, (dim_hidden,), jnp.float32) * 0.01
    w2 = jax.random.normal(kw2, (dim_hidden, dim_out), jnp.float32) / jnp.sqrt(dim_hidden)
    b2 = jax.random.normal(kb2, (dim_out,), jnp.float32) * 0.01

    pred, label = forward(x, y, (w1, b1, w2, b2))
    pred = jax.block_until_ready(pred)

    ref = _bf16_reference(x, w1, b1, w2, b2)
    assert pred.shape == (N, dim_out), pred.shape
    assert label.shape == (N,)
    assert jnp.allclose(pred, ref, atol=2e-2, rtol=2e-2), "dim_out=1 mismatch vs reference"

    # --- Case B: multi-class head, ragged N (standard path) -----------------
    N2, dim_out2 = 500, 8
    x2 = jax.random.normal(kx2, (N2, dim_in), dtype=jnp.float32)
    w2b = jax.random.normal(kw2b, (dim_hidden, dim_out2), jnp.float32) / jnp.sqrt(dim_hidden)
    b2b = jax.random.normal(kb2b, (dim_out2,), jnp.float32) * 0.01

    pred2 = gnn_inductive_node_head(x2, w1, b1, w2b, b2b)
    pred2 = jax.block_until_ready(pred2)

    ref2 = _bf16_reference(x2, w1, b1, w2b, b2b)
    assert pred2.shape == (N2, dim_out2), pred2.shape
    assert jnp.allclose(pred2, ref2, atol=2e-2, rtol=2e-2), "dim_out=8 mismatch vs reference"

    print("KERNEL_OK")
</pallas_src>

<mosaic_0001>
module attributes {stable_mosaic.version = 11 : i64} {
  func.func @_mlp_head_kernel_lane_dense(%arg0: i32, %arg1: memref<128x32xbf16, #tpu.memory_space<vmem>>, %arg2: memref<32x32xbf16, #tpu.memory_space<vmem>>, %arg3: memref<1x32xf32, #tpu.memory_space<vmem>>, %arg4: memref<1x32xbf16, #tpu.memory_space<vmem>>, %arg5: memref<1x1xf32, #tpu.memory_space<vmem>>, %arg6: memref<1x1x128xf32, #tpu.memory_space<vmem>>) attributes {dimension_semantics = [#tpu.dimension_semantics<parallel>], iteration_bounds = array<i64: 8>, scalar_prefetch = 0 : i64, scratch_operands = 0 : i64, tpu.core_type = #tpu.core_type<tc>, window_params = [{transform_indices = @transform_0, window_bounds = array<i64: 128, 32>}, {pipeline_mode = #tpu.pipeline_mode<synchronous>, transform_indices = @transform_1, window_bounds = array<i64: 32, 32>}, {pipeline_mode = #tpu.pipeline_mode<synchronous>, transform_indices = @transform_2, window_bounds = array<i64: 1, 32>}, {pipeline_mode = #tpu.pipeline_mode<synchronous>, transform_indices = @transform_3, window_bounds = array<i64: 1, 32>}, {pipeline_mode = #tpu.pipeline_mode<synchronous>, transform_indices = @transform_4, window_bounds = array<i64: 1, 1>}, {transform_indices = @transform_5, window_bounds = array<i64: 1, 1, 128>}]} {
    %c0 = arith.constant 0 : index
    %c0_0 = arith.constant 0 : index
    %0 = vector.load %arg1[%c0, %c0_0] : memref<128x32xbf16, #tpu.memory_space<vmem>>, vector<128x32xbf16>
    %c0_1 = arith.constant 0 : index
    %c0_2 = arith.constant 0 : index
    %1 = vector.load %arg2[%c0_1, %c0_2] : memref<32x32xbf16, #tpu.memory_space<vmem>>, vector<32x32xbf16>
    %cst = arith.constant dense<0.000000e+00> : vector<128x32xf32>
    %2 = tpu.matmul %0, %1, %cst {dimension_numbers = #tpu.dot_dimension_numbers<[1], [0], [0], [1], [0, 0, 1, 1], [], []>} : vector<128x32xbf16>, vector<32x32xbf16>, vector<128x32xf32> -> vector<128x32xf32>
    %c0_3 = arith.constant 0 : index
    %c0_4 = arith.constant 0 : index
    %3 = vector.load %arg3[%c0_3, %c0_4] : memref<1x32xf32, #tpu.memory_space<vmem>>, vector<1x32xf32>
    %4 = vector.broadcast %3 : vector<1x32xf32> to vector<128x32xf32>
    %5 = arith.addf %2, %4 : vector<128x32xf32>
    %cst_5 = arith.constant 0.000000e+00 : f32
    %6 = vector.broadcast %cst_5 : f32 to vector<128x32xf32>
    %7 = arith.maximumf %5, %6 : vector<128x32xf32>
    %c0_6 = arith.constant 0 : index
    %c0_7 = arith.constant 0 : index
    %8 = vector.load %arg4[%c0_6, %c0_7] : memref<1x32xbf16, #tpu.memory_space<vmem>>, vector<1x32xbf16>
    %9 = arith.truncf %7 : vector<128x32xf32> to vector<128x32xbf16>
    %cst_8 = arith.constant dense<0.000000e+00> : vector<1x128xf32>
    %10 = tpu.matmul %8, %9, %cst_8 {dimension_numbers = #tpu.dot_dimension_numbers<[1], [1], [0], [0], [0, 0, 1, 0], [], []>} : vector<1x32xbf16>, vector<128x32xbf16>, vector<1x128xf32> -> vector<1x128xf32>
    %c0_9 = arith.constant 0 : index
    %c0_10 = arith.constant 0 : index
    %11 = vector.load %arg5[%c0_9, %c0_10] : memref<1x1xf32, #tpu.memory_space<vmem>>, vector<1x1xf32>
    %12 = vector.broadcast %11 : vector<1x1xf32> to vector<1x128xf32>
    %13 = arith.addf %10, %12 : vector<1x128xf32>
    %14 = vector.shape_cast %13 : vector<1x128xf32> to vector<1x1x128xf32>
    %c0_11 = arith.constant 0 : index
    %c0_12 = arith.constant 0 : index
    %c0_13 = arith.constant 0 : index
    %15 = vector.load %arg6[%c0_11, %c0_12, %c0_13] : memref<1x1x128xf32, #tpu.memory_space<vmem>>, vector<1x1x128xf32>
    tpu.vector_store %arg6[%c0_11, %c0_12, %c0_13], %14 {strides = array<i32>} : memref<1x1x128xf32, #tpu.memory_space<vmem>>, vector<1x1x128xf32>,
    return
  }
  func.func @transform_0(%arg0: i32) -> (i32, i32) {
    %c0_i32 = arith.constant 0 : i32
    %c0_i32_0 = arith.constant 0 : i32
    return %arg0, %c0_i32 : i32, i32
  }
  func.func @transform_1(%arg0: i32) -> (i32, i32) {
    %c0_i32 = arith.constant 0 : i32
    %c0_i32_0 = arith.constant 0 : i32
    %c0_i32_1 = arith.constant 0 : i32
    return %c0_i32, %c0_i32_0 : i32, i32
  }
  func.func @transform_2(%arg0: i32) -> (i32, i32) {
    %c0_i32 = arith.constant 0 : i32
    %c0_i32_0 = arith.constant 0 : i32
    %c0_i32_1 = arith.constant 0 : i32
    return %c0_i32, %c0_i32_0 : i32, i32
  }
  func.func @transform_3(%arg0: i32) -> (i32, i32) {
    %c0_i32 = arith.constant 0 : i32
    %c0_i32_0 = arith.constant 0 : i32
    %c0_i32_1 = arith.constant 0 : i32
    return %c0_i32, %c0_i32_0 : i32, i32
  }
  func.func @transform_4(%arg0: i32) -> (i32, i32) {
    %c0_i32 = arith.constant 0 : i32
    %c0_i32_0 = arith.constant 0 : i32
    %c0_i32_1 = arith.constant 0 : i32
    return %c0_i32, %c0_i32_0 : i32, i32
  }
  func.func @transform_5(%arg0: i32) -> (i32, i32, i32) {
    %c0_i32 = arith.constant 0 : i32
    %c0_i32_0 = arith.constant 0 : i32
    %c0_i32_1 = arith.constant 0 : i32
    return %arg0, %c0_i32, %c0_i32_0 : i32, i32, i32
  }
}

</mosaic_0001>

<llo_original>
// kernel: tpu_custom_call.1
$region0: #{tpu_custom_call.1}
  #allocation0 [shape = 'u32[]', space=smem, size = 0x4, offset = 0x4, fixed_abs, tag = 'smem constant byte address 0x4 - core index']
  #allocation1 [shape = 'u32[144,128]{1,0:T(1,128)}', space=vmem, size = 0x12000, scoped, tag = 'internal scratch']
  #allocation2 [shape = 'f32[1,1]{1,0:T(1,128)S(1)}', space=vmem, size = 0x200, scoped, tag = 'scoped memory for tpu_custom_call.1']
  %s0 = inlined_call_operand.vmem [shape: bf16[1024,32], index: 0, kind: input, shape index: {}]
  %s1 = inlined_call_operand.vmem [shape: bf16[32,32], index: 1, kind: input, shape index: {}]
  %s2 = inlined_call_operand.vmem [shape: f32[1,32], index: 2, kind: input, shape index: {}]
  %s3 = inlined_call_operand.vmem [shape: bf16[1,32], index: 3, kind: input, shape index: {}]
  %s4 = inlined_call_operand.<no memory space> [shape: f32[1,1], index: 4, kind: input, shape index: {}]
  %s5 = inlined_call_operand.hbm [shape: f32[8,1,128], index: 5, kind: output, shape index: {}]
  %s6 = sld [smem:[#allocation0]]
  $region53: #{tpu_custom_call.1} parent=0
    _
  %s8 = ssub.s32 1, %s6
  %s9 = scalar_select 0, %s8, %s6
  %v10 = vstv %s4
  %11 = vst [vmem:[#allocation2] sm:$0x1] %v10
  $region1: #{tpu_custom_call.1} parent=0
    #allocation3 [shape = 'u8[1024]{0}', space=vmem, size = 0x400, scoped, tag = 'output window, operand 0']
    #allocation4 [shape = 's32[2]{0}', space=sflag, size = 0x8, scoped, tag = 'scoped memory for tpu_custom_call.1']
    %12 = vsyncpa [#allocation4], 0
    %s13 = scalar_lea.sflag [#allocation4], 1
    %14 = vsyncpa %s13, 0
    loop: start=0, step=1, limit=10
    $region2: #{tpu_custom_call.1} parent=1 // loop_pre_header
      _
    $region3: #{tpu_custom_call.1} parent=1 // loop_header
      %s16 = sphi 0, %s20
      %p17 = scmp.ge.s32.totalorder %s16, 10
      %s26 = sphi 0, %s28
      %s29 = sphi 0, %s26
      %s30 = sphi 0, %s29
      %s46 = sphi 0, %s30
      %s50 = sphi 0, %s50
      %s52 = sphi 0, %s50
      %s53 = sphi 0, %s52
      %s67 = sphi 0, %s53
      %s71 = sphi 0, %s71
      %s73 = sphi 0, %s71
      %s74 = sphi 0, %s73
      %s88 = sphi 0, %s74
      %s92 = sphi 0, %s92
      %s94 = sphi 0, %s92
      %s95 = sphi 0, %s94
      %s109 = sphi 0, %s95
      %s113 = sphi 0, %s113
      %s115 = sphi 0, %s113
      %s116 = sphi 0, %s115
      %s130 = sphi 0, %s116
      %s136 = sphi 0, %s138
      %s139 = sphi 0, %s136
      %s140 = sphi 0, %s139
      %s156 = sphi 0, %s140
    $region4: #{tpu_custom_call.1} parent=1 // loop_header_branch
      %19 = sbr.rel (%p17) target = $region8
    $region5: #{tpu_custom_call.1} parent=1 // loop_body
      %s21 = ssub.s32 %s16, 1
      %s22 = ssub.s32 %s16, 2
      %s23 = sadd.s32 %s16, 1
      %s24 = ssub.s32 %s16, %s23
      %p25 = scmp.eq.s32.totalorder %s24, 0
      %s27 = sadd.s32 %s26, 1
      %s28 = scalar_select %p25, %s26, %s27
      %p31 = pneg %p25
      %p32 = scmp.eq.s32.totalorder %s16, 7
      %p33 = por %p31, %p32
      %p34 = scmp.ne.s32.totalorder %s26, %s29
      %p35 = scmp.eq.s32.totalorder %s16, 0
      %p36 = por %p34, %p35
      %p37 = scmp.ne.s32.totalorder %s26, %s29
      %p38 = scmp.eq.s32.totalorder %s21, 7
      %p39 = por %p37, %p38
      %p40 = scmp.ne.s32.totalorder %s29, %s30
      %p41 = scmp.eq.s32.totalorder %s21, 0
      %p42 = por %p40, %p41
      %p43 = scmp.ne.s32.totalorder %s29, %s30
      %p44 = scmp.eq.s32.totalorder %s22, 7
      %p45 = por %p43, %p44
      %p47 = scmp.ne.s32.totalorder %s30, %s46
      %p48 = scmp.eq.s32.totalorder %s22, 0
      %p49 = por %p47, %p48
      %s51 = sadd.s32 %s50, 1
      %p54 = scmp.eq.s32.totalorder %s16, 7
      %p55 = scmp.ne.s32.totalorder %s50, %s52
      %p56 = scmp.eq.s32.totalorder %s16, 0
      %p57 = por %p55, %p56
      %p58 = scmp.ne.s32.totalorder %s50, %s52
      %p59 = scmp.eq.s32.totalorder %s21, 7
      %p60 = por %p58, %p59
      %p61 = scmp.ne.s32.totalorder %s52, %s53
      %p62 = scmp.eq.s32.totalorder %s21, 0
      %p63 = por %p61, %p62
      %p64 = scmp.ne.s32.totalorder %s52, %s53
      %p65 = scmp.eq.s32.totalorder %s22, 7
      %p66 = por %p64, %p65
      %p68 = scmp.ne.s32.totalorder %s53, %s67
      %p69 = scmp.eq.s32.totalorder %s22, 0
      %p70 = por %p68, %p69
      %s72 = sadd.s32 %s71, 1
      %p75 = scmp.eq.s32.totalorder %s16, 7
      %p76 = scmp.ne.s32.totalorder %s71, %s73
      %p77 = scmp.eq.s32.totalorder %s16, 0
      %p78 = por %p76, %p77
      %p79 = scmp.ne.s32.totalorder %s71, %s73
      %p80 = scmp.eq.s32.totalorder %s21, 7
      %p81 = por %p79, %p80
      %p82 = scmp.ne.s32.totalorder %s73, %s74
      %p83 = scmp.eq.s32.totalorder %s21, 0
      %p84 = por %p82, %p83
      %p85 = scmp.ne.s32.totalorder %s73, %s74
      %p86 = scmp.eq.s32.totalorder %s22, 7
      %p87 = por %p85, %p86
      %p89 = scmp.ne.s32.totalorder %s74, %s88
      %p90 = scmp.eq.s32.totalorder %s22, 0
      %p91 = por %p89, %p90
      %s93 = sadd.s32 %s92, 1
      %p96 = scmp.eq.s32.totalorder %s16, 7
      %p97 = scmp.ne.s32.totalorder %s92, %s94
      %p98 = scmp.eq.s32.totalorder %s16, 0
      %p99 = por %p97, %p98
      %p100 = scmp.ne.s32.totalorder %s92, %s94
      %p101 = scmp.eq.s32.totalorder %s21, 7
      %p102 = por %p100, %p101
      %p103 = scmp.ne.s32.totalorder %s94, %s95
      %p104 = scmp.eq.s32.totalorder %s21, 0
      %p105 = por %p103, %p104
      %p106 = scmp.ne.s32.totalorder %s94, %s95
      %p107 = scmp.eq.s32.totalorder %s22, 7
      %p108 = por %p106, %p107
      %p110 = scmp.ne.s32.totalorder %s95, %s109
      %p111 = scmp.eq.s32.totalorder %s22, 0
      %p112 = por %p110, %p111
      %s114 = sadd.s32 %s113, 1
      %p117 = scmp.eq.s32.totalorder %s16, 7
      %p118 = scmp.ne.s32.totalorder %s113, %s115
      %p119 = scmp.eq.s32.totalorder %s16, 0
      %p120 = por %p118, %p119
      %p121 = scmp.ne.s32.totalorder %s113, %s115
      %p122 = scmp.eq.s32.totalorder %s21, 7
      %p123 = por %p121, %p122
      %p124 = scmp.ne.s32.totalorder %s115, %s116
      %p125 = scmp.eq.s32.totalorder %s21, 0
      %p126 = por %p124, %p125
      %p127 = scmp.ne.s32.totalorder %s115, %s116
      %p128 = scmp.eq.s32.totalorder %s22, 7
      %p129 = por %p127, %p128
      %p131 = scmp.ne.s32.totalorder %s116, %s130
      %p132 = scmp.eq.s32.totalorder %s22, 0
      %p133 = por %p131, %p132
      %s134 = ssub.s32 %s16, %s23
      %p135 = scmp.eq.s32.totalorder %s134, 0
      %s137 = sadd.s32 %s136, 1
      %s138 = scalar_select %p135, %s136, %s137
      %p141 = pneg %p135
      %p142 = scmp.eq.s32.totalorder %s16, 7
      %p143 = por %p141, %p142
      %p144 = scmp.ne.s32.totalorder %s136, %s139
      %p145 = scmp.eq.s32.totalorder %s16, 0
      %p146 = por %p144, %p145
      %p147 = scmp.ne.s32.totalorder %s136, %s139
      %p148 = scmp.eq.s32.totalorder %s21, 7
      %p149 = por %p147, %p148
      %p150 = scmp.ne.s32.totalorder %s139, %s140
      %p151 = scmp.eq.s32.totalorder %s21, 0
      %p152 = por %p150, %p151
      %p153 = scmp.ne.s32.totalorder %s139, %s140
      %p154 = scmp.eq.s32.totalorder %s22, 7
      %p155 = por %p153, %p154
      %p157 = scmp.ne.s32.totalorder %s140, %s156
      %p158 = scmp.eq.s32.totalorder %s22, 0
      %p159 = por %p157, %p158
      %p160 = scmp.le.s32.totalorder 1, %s16
      %p161 = scmp.lt.s32.totalorder %s16, 9
      %p162 = pnand %p160, %p161
      %p163 = pneg %p162
      // Predicated region
      $region9: #{tpu_custom_call.1} parent=5 // pred_check
        _
      $region10: #{tpu_custom_call.1} parent=5 // pred_check_branch
        %165 = sbr.rel (%p162) target = $region12
      $region11: #{tpu_custom_call.1} parent=5 // pred_region
        %s166 = ssub.s32 %s16, 1
        // Predicated region
        $region13: #{tpu_custom_call.1} parent=11 // pred_check
          %p167 = pneg %p63
        $region14: #{tpu_custom_call.1} parent=11 // pred_check_branch
          %169 = sbr.rel (%p167) target = $region16
        $region15: #{tpu_custom_call.1} parent=11 // pred_region
          _
        $region16: #{tpu_custom_call.1} parent=11 // pred_fallthru
          _
        // Predicated region
        $region17: #{tpu_custom_call.1} parent=11 // pred_check
          %p170 = pneg %p84
        $region18: #{tpu_custom_call.1} parent=11 // pred_check_branch
          %172 = sbr.rel (%p170) target = $region20
        $region19: #{tpu_custom_call.1} parent=11 // pred_region
          _
        $region20: #{tpu_custom_call.1} parent=11 // pred_fallthru
          _
        // Predicated region
        $region21: #{tpu_custom_call.1} parent=11 // pred_check
          %p173 = pneg %p105
        $region22: #{tpu_custom_call.1} parent=11 // pred_check_branch
          %175 = sbr.rel (%p173) target = $region24
        $region23: #{tpu_custom_call.1} parent=11 // pred_region
          _
        $region24: #{tpu_custom_call.1} parent=11 // pred_fallthru
          _
        // Predicated region
        $region25: #{tpu_custom_call.1} parent=11 // pred_check
          %p176 = pneg %p126
        $region26: #{tpu_custom_call.1} parent=11 // pred_check_branch
          %178 = sbr.rel (%p176) target = $region28
        $region27: #{tpu_custom_call.1} parent=11 // pred_region
          _
        $region28: #{tpu_custom_call.1} parent=11 // pred_fallthru
          _
      $region12: #{tpu_custom_call.1} parent=5 // pred_fallthru
        _
      %p179 = scmp.lt.s32.totalorder %s16, 8
      // Predicated region
      $region29: #{tpu_custom_call.1} parent=5 // pred_check
        %p180 = pneg %p179
      $region30: #{tpu_custom_call.1} parent=5 // pred_check_branch
        %182 = sbr.rel (%p180) target = $region32
      $region31: #{tpu_custom_call.1} parent=5 // pred_region
        // Predicated region
        $region33: #{tpu_custom_call.1} parent=31 // pred_check
          %p183 = pneg %p36
        $region34: #{tpu_custom_call.1} parent=31 // pred_check_branch
          %185 = sbr.rel (%p183) target = $region36
        $region35: #{tpu_custom_call.1} parent=31 // pred_region
          %s186 = smul.u32 16, %s16
          %p187 = scmp.lt.s32.totalorder %s186, 127
          %s188 = scalar_select %p187, %s186, 127
          %s189 = smul.addr %s188, 4
          %s190 = scalar_lea.vmem %s0, %s189
          %s191 = smul.u32 16, %s16
        $region36: #{tpu_custom_call.1} parent=31 // pred_fallthru
          _
      $region32: #{tpu_custom_call.1} parent=5 // pred_fallthru
        _
      %p192 = scmp.le.s32.totalorder 1, %s16
      %p193 = scmp.lt.s32.totalorder %s16, 9
      %p194 = pnand %p192, %p193
      %p195 = pneg %p194
      // Predicated region
      $region37: #{tpu_custom_call.1} parent=5 // pred_check
        _
      $region38: #{tpu_custom_call.1} parent=5 // pred_check_branch
        %197 = sbr.rel (%p194) target = $region40
      $region39: #{tpu_custom_call.1} parent=5 // pred_region
        %s198 = ssub.s32 %s16, 1
        %s199 = smul.u32 16, %s21
        %p200 = scmp.lt.s32.totalorder %s199, 127
        %s201 = scalar_select %p200, %s199, 127
        %s202 = smul.addr %s201, 4
        %s203 = scalar_lea.vmem %s0, %s202
        %p204 = pneg %p42
        %p205 = pneg %p39
        %p206 = pneg %p63
        %p207 = pneg %p60
        %p208 = pneg %p84
        %p209 = pneg %p81
        %p210 = pneg %p105
        %p211 = pneg %p102
        %p212 = pneg %p126
        %p213 = pneg %p123
        %p214 = pneg %p152
        %p215 = pneg %p149
        %s216 = sand.u32 %s139, 1
        %s217 = scalar_lea.sflag [#allocation4], %s216
        %s218 = sand.u32 %s139, 1
        %s219 = scalar_lea.vmem [#allocation3], %s218
        %s220 = smul.u32 16, %s21
        %p221 = scmp.lt.s32.totalorder %s220, 127
        %s222 = scalar_select %p221, %s220, 127
        %s223 = smul.addr %s222, 4
        %s224 = scalar_lea.vmem %s0, %s223
        %s225 = smul.u32 16, %s21
        %v227 = vld [vmem:[%s224] sm:$0xf]
        %v228 = vld [vmem:[%s224 + $0x4] sm:$0xf]
        %v229 = vld [vmem:[%s224 + $0x8] sm:$0xf]
        %v230 = vld [vmem:[%s224 + $0xc] sm:$0xf]
        %v231 = vld [vmem:[%s224 + $0x10] sm:$0xf]
        %v232 = vld [vmem:[%s224 + $0x14] sm:$0xf]
        %v233 = vld [vmem:[%s224 + $0x18] sm:$0xf]
        %v234 = vld [vmem:[%s224 + $0x1c] sm:$0xf]
        %v235 = vld [vmem:[%s224 + $0x20] sm:$0xf]
        %v236 = vld [vmem:[%s224 + $0x24] sm:$0xf]
        %v237 = vld [vmem:[%s224 + $0x28] sm:$0xf]
        %v238 = vld [vmem:[%s224 + $0x2c] sm:$0xf]
        %v239 = vld [vmem:[%s224 + $0x30] sm:$0xf]
        %v240 = vld [vmem:[%s224 + $0x34] sm:$0xf]
        %v241 = vld [vmem:[%s224 + $0x38] sm:$0xf]
        %v242 = vld [vmem:[%s224 + $0x3c] sm:$0xf]
        %v243 = vld [vmem:[%s1] sm:$0xf]
        %v244 = vld [vmem:[%s1 + $0x4] sm:$0xf]
        %v245 = vld [vmem:[%s1 + $0x8] sm:$0xf]
        %v246 = vld [vmem:[%s1 + $0xc] sm:$0xf]
        %v247 = vld [vmem:[%s2] sm:$0x1]
        %v249 = vlaneseq
        %v250 = vshrl.u32 %v249, 7
        %v251 = vsub.s32 0, %v250
        %v252 = vrot.slane %v247, %v251
        %v270 = vunpack.c.l.b16 %v227
        %v271 = vunpack.c.l.b16 %v228
        %v272 = vunpack.c.l.b16 %v229
        %v273 = vunpack.c.l.b16 %v230
        %v274 = vunpack.c.l.b16 %v231
        %v275 = vunpack.c.l.b16 %v232
        %v276 = vunpack.c.l.b16 %v233
        %v277 = vunpack.c.l.b16 %v234
        %v278 = vunpack.c.l.b16 %v235
        %v279 = vunpack.c.l.b16 %v236
        %v280 = vunpack.c.l.b16 %v237
        %v281 = vunpack.c.l.b16 %v238
        %v282 = vunpack.c.l.b16 %v239
        %v283 = vunpack.c.l.b16 %v240
        %v284 = vunpack.c.l.b16 %v241
        %v285 = vunpack.c.l.b16 %v242
        %v286 = vpack.c.b16 %v271, %v270
        %v287 = vpack.c.b16 %v273, %v272
        %v288 = vpack.c.b16 %v275, %v274
        %v289 = vpack.c.b16 %v277, %v276
        %v290 = vpack.c.b16 %v279, %v278
        %v291 = vpack.c.b16 %v281, %v280
        %v292 = vpack.c.b16 %v283, %v282
        %v293 = vpack.c.b16 %v285, %v284
        %v298 = vunpack.c.l.b16 %v243
        %v299 = vunpack.c.l.b16 %v244
        %v300 = vunpack.c.l.b16 %v245
        %v301 = vunpack.c.l.b16 %v246
        %v302 = vpack.c.b16 %v299, %v298
        %v303 = vpack.c.b16 %v301, %v300
        %vm306 = vcmask 261120
        %v308 = vsel %vm306, %v286, 0
        %v311 = vsel %vm306, %v287, 0
        %v314 = vsel %vm306, %v288, 0
        %v317 = vsel %vm306, %v289, 0
        %v320 = vsel %vm306, %v290, 0
        %v323 = vsel %vm306, %v291, 0
        %v326 = vsel %vm306, %v292, 0
        %v329 = vsel %vm306, %v293, 0
        %331 = vmatprep.subr.bf16.mxu0 0
        %332 = vmatpush1.bf16.msra.mxu0 0
        %333 = vmatprep.subr.bf16.mxu0 0
        %334 = vmatpush1.bf16.msra.mxu0 0
        %335 = vmatprep.subr.bf16.mxu0 0
        %336 = vmatpush1.bf16.msra.mxu0 0
        %337 = vmatprep.subr.bf16.mxu0 0
        %338 = vmatpush1.bf16.msra.mxu0 0
        %339 = vmatprep.subr.bf16.mxu0 0
        %340 = vmatpush1.bf16.msra.mxu0 0
        %341 = vmatprep.subr.bf16.mxu0 0
        %342 = vmatpush1.bf16.msra.mxu0 0
        %343 = vmatprep.subr.bf16.mxu0 0
        %344 = vmatpush1.bf16.msra.mxu0 %v303
        %345 = vmatprep.subr.bf16.mxu0 0
        %346 = vmatpush1.bf16.msra.mxu0 %v302
        %347 = vmatprep.subr.bf16.mxu0 0
        %348 = vmatpush2.bf16.msra.mxu0 0
        %349 = vmatprep.subr.bf16.mxu0 0
        %350 = vmatpush2.bf16.msra.mxu0 0
        %351 = vmatprep.subr.bf16.mxu0 0
        %352 = vmatpush2.bf16.msra.mxu0 0
        %353 = vmatprep.subr.bf16.mxu0 0
        %354 = vmatpush2.bf16.msra.mxu0 0
        %355 = vmatprep.subr.bf16.mxu0 0
        %356 = vmatpush2.bf16.msra.mxu0 0
        %357 = vmatprep.subr.bf16.mxu0 0
        %358 = vmatpush2.bf16.msra.mxu0 0
        %359 = vmatprep.subr.bf16.mxu0 0
        %360 = vmatpush2.bf16.msra.mxu0 0
        %361 = vmatprep.subr.bf16.mxu0 0
        %362 = vmatpush2.bf16.msra.mxu0 0
        %363 = vmatprep.mubr.bf16.mxu0 0
        %364 = vmatmul.mubr.bf16.gmra.mxu0 %v308
        %v365 = vpop.f32.mrf.mxu0
        %v366 = vadd.f32 %v252, %v365
        %v367 = vpop.f32.mrf.mxu0
        %v368 = vpop.f32.mrf.mxu0
        %v369 = vadd.f32 %v252, %v368
        %v370 = vpop.f32.mrf.mxu0
        %371 = vmatprep.mubr.bf16.mxu0 0
        %372 = vmatmul.mubr.bf16.gmra.mxu0 %v311
        %v373 = vpop.f32.mrf.mxu0
        %v374 = vadd.f32 %v252, %v373
        %v375 = vpop.f32.mrf.mxu0
        %v376 = vpop.f32.mrf.mxu0
        %v377 = vadd.f32 %v252, %v376
        %v378 = vpop.f32.mrf.mxu0
        %379 = vmatprep.mubr.bf16.mxu0 0
        %380 = vmatmul.mubr.bf16.gmra.mxu0 %v314
        %v381 = vpop.f32.mrf.mxu0
        %v382 = vadd.f32 %v252, %v381
        %v383 = vpop.f32.mrf.mxu0
        %v384 = vpop.f32.mrf.mxu0
        %v385 = vadd.f32 %v252, %v384
        %v386 = vpop.f32.mrf.mxu0
        %387 = vmatprep.mubr.bf16.mxu0 0
        %388 = vmatmul.mubr.bf16.gmra.mxu0 %v317
        %v389 = vpop.f32.mrf.mxu0
        %v390 = vadd.f32 %v252, %v389
        %v391 = vpop.f32.mrf.mxu0
        %v392 = vpop.f32.mrf.mxu0
        %v393 = vadd.f32 %v252, %v392
        %v394 = vpop.f32.mrf.mxu0
        %395 = vmatprep.mubr.bf16.mxu0 0
        %396 = vmatmul.mubr.bf16.gmra.mxu0 %v320
        %v397 = vpop.f32.mrf.mxu0
        %v398 = vadd.f32 %v252, %v397
        %v399 = vpop.f32.mrf.mxu0
        %v400 = vpop.f32.mrf.mxu0
        %v401 = vadd.f32 %v252, %v400
        %v402 = vpop.f32.mrf.mxu0
        %403 = vmatprep.mubr.bf16.mxu0 0
        %404 = vmatmul.mubr.bf16.gmra.mxu0 %v323
        %v405 = vpop.f32.mrf.mxu0
        %v406 = vadd.f32 %v252, %v405
        %v407 = vpop.f32.mrf.mxu0
        %v408 = vpop.f32.mrf.mxu0
        %v409 = vadd.f32 %v252, %v408
        %v410 = vpop.f32.mrf.mxu0
        %411 = vmatprep.mubr.bf16.mxu0 0
        %412 = vmatmul.mubr.bf16.gmra.mxu0 %v326
        %v413 = vpop.f32.mrf.mxu0
        %v414 = vadd.f32 %v252, %v413
        %v415 = vpop.f32.mrf.mxu0
        %v416 = vpop.f32.mrf.mxu0
        %v417 = vadd.f32 %v252, %v416
        %v418 = vpop.f32.mrf.mxu0
        %419 = vmatprep.mubr.bf16.mxu0 0
        %420 = vmatmul.mubr.bf16.gmra.mxu0 %v329
        %v421 = vpop.f32.mrf.mxu0
        %v422 = vadd.f32 %v252, %v421
        %v423 = vpop.f32.mrf.mxu0
        %v424 = vpop.f32.mrf.mxu0
        %v425 = vadd.f32 %v252, %v424
        %v426 = vpop.f32.mrf.mxu0
        %427 = vdwg.mxu0
        %v428 = vmax.f32 %v366, 0.0
        %v429 = vmax.f32 %v369, 0.0
        %v430 = vmax.f32 %v374, 0.0
        %v431 = vmax.f32 %v377, 0.0
        %v432 = vmax.f32 %v382, 0.0
        %v433 = vmax.f32 %v385, 0.0
        %v434 = vmax.f32 %v390, 0.0
        %v435 = vmax.f32 %v393, 0.0
        %v436 = vmax.f32 %v398, 0.0
        %v437 = vmax.f32 %v401, 0.0
        %v438 = vmax.f32 %v406, 0.0
        %v439 = vmax.f32 %v409, 0.0
        %v440 = vmax.f32 %v414, 0.0
        %v441 = vmax.f32 %v417, 0.0
        %v442 = vmax.f32 %v422, 0.0
        %v443 = vmax.f32 %v425, 0.0
        %v444 = vld [vmem:[%s3] sm:$0x1]
        %v445 = vpack.c.bf16 %v429, %v428
        %v446 = vpack.c.bf16 %v431, %v430
        %v447 = vpack.c.bf16 %v433, %v432
        %v448 = vpack.c.bf16 %v435, %v434
        %v449 = vpack.c.bf16 %v437, %v436
        %v450 = vpack.c.bf16 %v439, %v438
        %v451 = vpack.c.bf16 %v441, %v440
        %v452 = vpack.c.bf16 %v443, %v442
        %v453 = vld [vmem:[#allocation2] sm:$0x1]
        %455 = vset.pattern.permute.xlu0 0
        %456 = vperm.xlu0 %455, %v453
        %v457 = vpop.permute.xlu0 %456
        %v459 = vlaneseq
        %v460 = vshrl.u32 %v459, 7
        %v461 = vsub.s32 0, %v460
        %v462 = vrot.slane %v457, %v461
        %v464 = vsel %vm306, %v444, 0
        %v467 = vsel %vm306, %v445, 0
        %v470 = vsel %vm306, %v446, 0
        %v473 = vsel %vm306, %v447, 0
        %v476 = vsel %vm306, %v448, 0
        %v479 = vsel %vm306, %v449, 0
        %v482 = vsel %vm306, %v450, 0
        %v485 = vsel %vm306, %v451, 0
        %v488 = vsel %vm306, %v452, 0
        %490 = vmatprep.subr.bf16.mxu0 0
        %491 = vmatpush1.bf16.xpose.msra.mxu0 %v488
        %492 = vmatprep.subr.bf16.mxu0 0
        %493 = vmatpush1.bf16.xpose.msra.mxu0 %v485
        %494 = vmatprep.subr.bf16.mxu0 0
        %495 = vmatpush1.bf16.xpose.msra.mxu0 %v482
        %496 = vmatprep.subr.bf16.mxu0 0
        %497 = vmatpush1.bf16.xpose.msra.mxu0 %v479
        %498 = vmatprep.subr.bf16.mxu0 0
        %499 = vmatpush1.bf16.xpose.msra.mxu0 %v476
        %500 = vmatprep.subr.bf16.mxu0 0
        %501 = vmatpush1.bf16.xpose.msra.mxu0 %v473
        %502 = vmatprep.subr.bf16.mxu0 0
        %503 = vmatpush1.bf16.xpose.msra.mxu0 %v470
        %504 = vmatprep.subr.bf16.mxu0 0
        %505 = vmatpush1.bf16.xpose.msra.mxu0 %v467
        %506 = vmatprep.subr.bf16.mxu0 0
        %507 = vmatpush2.bf16.xpose.msra.mxu0 0
        %508 = vmatprep.subr.bf16.mxu0 0
        %509 = vmatpush2.bf16.xpose.msra.mxu0 0
        %510 = vmatprep.subr.bf16.mxu0 0
        %511 = vmatpush2.bf16.xpose.msra.mxu0 0
        %512 = vmatprep.subr.bf16.mxu0 0
        %513 = vmatpush2.bf16.xpose.msra.mxu0 0
        %514 = vmatprep.subr.bf16.mxu0 0
        %515 = vmatpush2.bf16.xpose.msra.mxu0 0
        %516 = vmatprep.subr.bf16.mxu0 0
        %517 = vmatpush2.bf16.xpose.msra.mxu0 0
        %518 = vmatprep.subr.bf16.mxu0 0
        %519 = vmatpush2.bf16.xpose.msra.mxu0 0
        %520 = vmatprep.subr.bf16.mxu0 0
        %521 = vmatpush2.bf16.xpose.msra.mxu0 0
        %522 = vmatprep.mubr.bf16.mxu0 0
        %523 = vmatmul.mubr.bf16.gmra.mxu0 %v464
        %v524 = vpop.f32.mrf.mxu0
        %v525 = vadd.f32 %v462, %v524
        %v526 = vpop.f32.mrf.mxu0
        %v527 = vpop.f32.mrf.mxu0
        %v528 = vpop.f32.mrf.mxu0
        %529 = vdwg.mxu0
        %530 = vst [vmem:[%s219] sm:$0x1] %v525
        %s531 = sand.u32 %s139, 1
        %s532 = scalar_lea.sflag [#allocation4], %s531
        %s533 = sand.u32 %s139, 1
        %s534 = scalar_lea.vmem [#allocation3], %s533
        // Predicated region
        $region41: #{tpu_custom_call.1} parent=39 // pred_check
          %p535 = pneg %p149
        $region42: #{tpu_custom_call.1} parent=39 // pred_check_branch
          %537 = sbr.rel (%p535) target = $region44
        $region43: #{tpu_custom_call.1} parent=39 // pred_region
          %s539 = ssub.s32 16, 16
          %540 = vsyncadd %s532, %s539
          %s541 = smul.addr %s21, 16
          %s542 = scalar_lea.hbm %s5, %s541
          %s544 = sshll.u32 %s534, 4
          %s545 = int_to_ptr.vmem [resolvable:$true] %s544
          %547 = dma.vmem_to_hbm [thread:$0]  %s545, 16, %s542, %s532
        $region44: #{tpu_custom_call.1} parent=39 // pred_fallthru
          _
      $region40: #{tpu_custom_call.1} parent=5 // pred_fallthru
        _
      %p548 = scmp.le.s32.totalorder 2, %s16
      // Predicated region
      $region45: #{tpu_custom_call.1} parent=5 // pred_check
        %p549 = pneg %p548
      $region46: #{tpu_custom_call.1} parent=5 // pred_check_branch
        %551 = sbr.rel (%p549) target = $region48
      $region47: #{tpu_custom_call.1} parent=5 // pred_region
        %s552 = ssub.s32 %s16, 2
        // Predicated region
        $region49: #{tpu_custom_call.1} parent=47 // pred_check
          %p553 = pneg %p155
        $region50: #{tpu_custom_call.1} parent=47 // pred_check_branch
          %555 = sbr.rel (%p553) target = $region52
        $region51: #{tpu_custom_call.1} parent=47 // pred_region
          %s556 = sand.u32 %s140, 1
          %s557 = scalar_lea.sflag [#allocation4], %s556
          %s558 = sand.u32 %s140, 1
          %s559 = scalar_lea.vmem [#allocation3], %s558
          %560 = dma.done %s557, 16
        $region52: #{tpu_custom_call.1} parent=47 // pred_fallthru
          _
      $region48: #{tpu_custom_call.1} parent=5 // pred_fallthru
        _
    $region6: #{tpu_custom_call.1} parent=1 // loop_footer
      %s20 = sadd.s32 1, %s16
    $region7: #{tpu_custom_call.1} parent=1 // loop_footer_branch
      %15 = sbr.rel target = $region3
    $region8: #{tpu_custom_call.1} parent=1 // loop_exit
      _
    %561 = vsyncpa [#allocation4], 1
    %s562 = scalar_lea.sflag [#allocation4], 1
    %563 = vsyncpa %s562, 1

</llo_original>
